<compile_context>
chip_gen: v5e
topology: v5e:2x2
jax: 0.10.0
libtpu: 0.0.40
codegen_flags: <defaults>
</compile_context>

<pallas_src>
from functools import partial

import jax
import jax.numpy as jnp
from jax.experimental import pallas as pl
from jax.experimental.pallas import tpu as pltpu


def _dict_affine_kernel(w_ref, b_ref, x_ref, o_ref):
    """o[k, :] = x[k, :] * w[k, 0] + b[k, 0] — one broadcasted FMA on one tile."""
    o_ref[...] = x_ref[...] * w_ref[...] + b_ref[...]


@partial(jax.jit, static_argnames=("input_keys", "output_keys"))
def dict_io_forward(x_dict, input_keys, output_keys, weights, biases):
    """Applies per-key Linear(1,1) using a single grid-less Pallas kernel.

    x_dict:    {key: (B, 1) float32}
    weights:   (K,) float32  (the (1,1) Linear weight per key, squeezed)
    biases:    (K,) float32  (the (1,) Linear bias per key)
    Returns:   {out_key: (B, 1) float32}
    """
    assert len(input_keys) == len(output_keys)
    K = len(input_keys)
    B = x_dict[input_keys[0]].shape[0]

    # Pack K x (B, 1) -> (K, B): key axis on sublanes, batch on lanes.
    x_packed = jnp.concatenate(
        [x_dict[k].astype(jnp.float32).reshape(1, B) for k in input_keys], axis=0
    )
    w2d = weights.astype(jnp.float32).reshape(K, 1)
    b2d = biases.astype(jnp.float32).reshape(K, 1)

    out_packed = pl.pallas_call(
        _dict_affine_kernel,
        out_shape=jax.ShapeDtypeStruct((K, B), jnp.float32),
        in_specs=[
            pl.BlockSpec(memory_space=pltpu.MemorySpace.VMEM),  # weights (K, 1)
            pl.BlockSpec(memory_space=pltpu.MemorySpace.VMEM),  # biases  (K, 1)
            pl.BlockSpec(memory_space=pltpu.MemorySpace.VMEM),  # x       (K, B)
        ],
        out_specs=pl.BlockSpec(memory_space=pltpu.MemorySpace.VMEM),
    )(w2d, b2d, x_packed)

    # Slice back to the module's per-key (B, 1) output shape.
    return {
        out_k: out_packed[i].reshape(B, 1) for i, out_k in enumerate(output_keys)
    }


if __name__ == "__main__":
    input_keys = ("x1", "x2", "x3")
    output_keys = ("y1", "y2", "y3")
    K = len(input_keys)
    B = 8  # batch

    key = jax.random.PRNGKey(0)
    k_w, k_b, k_x = jax.random.split(key, 3)

    # Deterministic per-key Linear(1,1) parameters (weight (1,1) -> scalar,
    # bias (1,) -> scalar), mimicking nn.Linear's uniform(-1, 1) bound (fan_in=1).
    weights = jax.random.uniform(k_w, (K,), jnp.float32, -1.0, 1.0)
    biases = jax.random.uniform(k_b, (K,), jnp.float32, -1.0, 1.0)

    # Deterministic dict inputs, each (B, 1)
    x_all = jax.random.normal(k_x, (K, B, 1), jnp.float32)
    x_dict = {k: x_all[i] for i, k in enumerate(input_keys)}

    out = dict_io_forward(x_dict, input_keys, output_keys, weights, biases)
    jax.block_until_ready(out)

    # Reference check (plain JAX) for each key
    for i, (in_k, out_k) in enumerate(zip(input_keys, output_keys)):
        ref = x_dict[in_k] * weights[i] + biases[i]
        assert jnp.allclose(out[out_k], ref, atol=1e-6), out_k
        assert out[out_k].shape == (B, 1)

    print("KERNEL_OK")
</pallas_src>

<mosaic_0001>
module attributes {stable_mosaic.version = 11 : i64} {
  func.func @_dict_affine_kernel(%arg0: memref<3x1xf32, #tpu.memory_space<vmem>>, %arg1: memref<3x1xf32, #tpu.memory_space<vmem>>, %arg2: memref<3x8xf32, #tpu.memory_space<vmem>>, %arg3: memref<3x8xf32, #tpu.memory_space<vmem>>) attributes {dimension_semantics = [], scalar_prefetch = 0 : i64, scratch_operands = 0 : i64, tpu.core_type = #tpu.core_type<tc>} {
    %c0 = arith.constant 0 : index
    %c0_0 = arith.constant 0 : index
    %0 = vector.load %arg2[%c0, %c0_0] : memref<3x8xf32, #tpu.memory_space<vmem>>, vector<3x8xf32>
    %c0_1 = arith.constant 0 : index
    %c0_2 = arith.constant 0 : index
    %1 = vector.load %arg0[%c0_1, %c0_2] : memref<3x1xf32, #tpu.memory_space<vmem>>, vector<3x1xf32>
    %2 = vector.broadcast %1 : vector<3x1xf32> to vector<3x8xf32>
    %3 = arith.mulf %0, %2 : vector<3x8xf32>
    %c0_3 = arith.constant 0 : index
    %c0_4 = arith.constant 0 : index
    %4 = vector.load %arg1[%c0_3, %c0_4] : memref<3x1xf32, #tpu.memory_space<vmem>>, vector<3x1xf32>
    %5 = vector.broadcast %4 : vector<3x1xf32> to vector<3x8xf32>
    %6 = arith.addf %3, %5 : vector<3x8xf32>
    %c0_5 = arith.constant 0 : index
    %c0_6 = arith.constant 0 : index
    %7 = vector.load %arg3[%c0_5, %c0_6] : memref<3x8xf32, #tpu.memory_space<vmem>>, vector<3x8xf32>
    tpu.vector_store %arg3[%c0_5, %c0_6], %6 {strides = array<i32>} : memref<3x8xf32, #tpu.memory_space<vmem>>, vector<3x8xf32>,
    return
  }
}

</mosaic_0001>

<llo_original>
// kernel: dict_io_forward.1
$region0: #{dict_io_forward.1}
  #allocation0 [shape = 'u32[]', space=smem, size = 0x4, offset = 0x4, fixed_abs, tag = 'smem constant byte address 0x4 - core index']
  #allocation1 [shape = 'u32[72,128]{1,0:T(1,128)}', space=vmem, size = 0x9000, scoped, tag = 'internal scratch']
  %s0 = inlined_call_operand.vmem [shape: f32[3,1], index: 0, kind: input, shape index: {}]
  %s1 = inlined_call_operand.vmem [shape: f32[3,1], index: 1, kind: input, shape index: {}]
  %s2 = inlined_call_operand.vmem [shape: f32[3,8], index: 2, kind: input, shape index: {}]
  %s3 = inlined_call_operand.vmem [shape: f32[3,8], index: 3, kind: output, shape index: {}]
  %s4 = sld [smem:[#allocation0]]
  $region22: #{dict_io_forward.1} parent=0
    _
  %s6 = ssub.s32 1, %s4
  %s7 = scalar_select 0, %s6, %s4
  // Predicated region
  $region2: #{dict_io_forward.1} parent=0 // pred_check
    _
  $region3: #{dict_io_forward.1} parent=0 // pred_check_branch
    %9 = sbr.rel (0) target = $region5
  $region4: #{dict_io_forward.1} parent=0 // pred_region
    _
  $region5: #{dict_io_forward.1} parent=0 // pred_fallthru
    _
  // Predicated region
  $region6: #{dict_io_forward.1} parent=0 // pred_check
    _
  $region7: #{dict_io_forward.1} parent=0 // pred_check_branch
    %11 = sbr.rel (0) target = $region9
  $region8: #{dict_io_forward.1} parent=0 // pred_region
    _
  $region9: #{dict_io_forward.1} parent=0 // pred_fallthru
    _
  // Predicated region
  $region10: #{dict_io_forward.1} parent=0 // pred_check
    _
  $region11: #{dict_io_forward.1} parent=0 // pred_check_branch
    %13 = sbr.rel (0) target = $region13
  $region12: #{dict_io_forward.1} parent=0 // pred_region
    _
  $region13: #{dict_io_forward.1} parent=0 // pred_fallthru
    _
  %v14 = vld [vmem:[%s2] sm:$0x7]
  %v15 = vld [vmem:[%s0] sm:$0x7]
  %17 = vset.pattern.permute.xlu0 0
  %18 = vperm.xlu0 %17, %v15
  %v19 = vpop.permute.xlu0 %18
  %v21 = vmul.f32 %v14, %v19
  %v22 = vld [vmem:[%s1] sm:$0x7]
  %24 = vset.pattern.permute.xlu0 0
  %25 = vperm.xlu0 %24, %v22
  %v26 = vpop.permute.xlu0 %25
  %v28 = vadd.f32 %v21, %v26
  %vm29 = vcmask 59392
  %30 = vst.msk [vmem:[%s3] sm:$0x7] %vm29, %v28
  // Predicated region
  $region14: #{dict_io_forward.1} parent=0 // pred_check
    _
  $region15: #{dict_io_forward.1} parent=0 // pred_check_branch
    %32 = sbr.rel (0) target = $region17
  $region16: #{dict_io_forward.1} parent=0 // pred_region
    _
  $region17: #{dict_io_forward.1} parent=0 // pred_fallthru
    _
  // Predicated region
  $region18: #{dict_io_forward.1} parent=0 // pred_check
    _
  $region19: #{dict_io_forward.1} parent=0 // pred_check_branch
    %34 = sbr.rel (0) target = $region21
  $region20: #{dict_io_forward.1} parent=0 // pred_region
    _
  $region21: #{dict_io_forward.1} parent=0 // pred_fallthru
    _

</llo_original>
